<compile_context>
chip_gen: v7x
topology: tpu7x:2x2x1
jax: 0.10.0
libtpu: 0.0.40
codegen_flags: <defaults>
</compile_context>

<pallas_src>
import functools

import jax
import jax.numpy as jnp
from jax.experimental import pallas as pl
from jax.experimental.pallas import tpu as pltpu


def attention_kernel(out_e_ref, h_ref, w1_ref, b12_ref, w2_ref, w3_ref, a_ref,
                     *, tile_b, frames):
    # out_e_ref: (tile_b*T, E) bf16    h_ref: (tile_b, D) bf16
    # w1: (E, P) bf16   b12: (1, P) f32   w2: (D, P) bf16   w3: (1, P) f32
    # a_ref: (tile_b, T) f32

    # linear1 over the flattened tile: (tile_b*T, E) @ (E, P), f32 accumulate.
    pe = jnp.dot(out_e_ref[...], w1_ref[...], preferred_element_type=jnp.float32)

    # linear2 once per tile: (tile_b, D) @ (D, P); pre-combined bias added on the
    # small (tile_b, P) slab.
    ph = jnp.dot(h_ref[...], w2_ref[...], preferred_element_type=jnp.float32)
    proj = ph + b12_ref[...]                                    # (tile_b, P)

    # Broadcast the per-batch projection over the T frames and apply tanh.
    # (T is a multiple of 8, so this reshape is a free relayout.)
    x = jnp.tanh(pe.reshape(tile_b, frames, -1) + proj[:, None, :])  # (tile_b, T, P)

    # linear3 (no bias, output width 1) as VPU mul + lane reduction -> (tile_b, T).
    s = jnp.sum(x * w3_ref[...], axis=-1)                       # (tile_b, T), T on lanes

    # Softmax over the frame axis (lanes). Exact divide so rows sum to 1.
    m = jnp.max(s, axis=-1, keepdims=True)                      # (tile_b, 1)
    e = jnp.exp(s - m)                                          # (tile_b, T)
    denom = jnp.sum(e, axis=-1, keepdims=True)                  # (tile_b, 1)
    a_ref[...] = (e / denom).astype(a_ref.dtype)


def attention_layer(out_e, h, w1, b12, w2, w3, *, tile_b=None,
                    vmem_limit_bytes=32 * 1024 * 1024):
    """out_e: (B, T, E), h: (B, D) -> a: (B, T) f32 softmax attention weights.

    w1 (E, P) / w2 (D, P) may already be bf16 (param-prep); b12 = b1 + b2.
    """
    B, T, E = out_e.shape
    D = h.shape[1]
    P = w1.shape[1]

    # HBM-bound: stream activations in bf16; MXU is native bf16 on v5e/v6e/v7x.
    out_e_flat = out_e.reshape(B * T, E).astype(jnp.bfloat16)
    h_bf = h.astype(jnp.bfloat16)
    w1_bf = w1.astype(jnp.bfloat16)
    w2_bf = w2.astype(jnp.bfloat16)
    b12_2d = b12.reshape(1, P).astype(jnp.float32)
    w3_2d = w3.reshape(1, P).astype(jnp.float32)

    # Batch-tile grid: target ~1024 flattened rows per tile (keeps double-buffered
    # bf16 input tiles + f32 intermediates well under v7x's VMEM); clamp to B at
    # toy sizes (here -> tile_b = B, grid = (1,)).
    if tile_b is None:
        tile_b = max(1, min(B, max(1, 1024 // max(T, 1))))
    while B % tile_b:
        tile_b -= 1
    grid = (B // tile_b,)

    kernel = functools.partial(attention_kernel, tile_b=tile_b, frames=T)

    return pl.pallas_call(
        kernel,
        out_shape=jax.ShapeDtypeStruct((B, T), jnp.float32),
        grid=grid,
        in_specs=[
            pl.BlockSpec((tile_b * T, E), lambda i: (i, 0)),   # out_e rows, tiled
            pl.BlockSpec((tile_b, D), lambda i: (i, 0)),       # h rows, tiled
            pl.BlockSpec((E, P), lambda i: (0, 0)),            # weights: VMEM-resident
            pl.BlockSpec((1, P), lambda i: (0, 0)),
            pl.BlockSpec((D, P), lambda i: (0, 0)),
            pl.BlockSpec((1, P), lambda i: (0, 0)),
        ],
        out_specs=pl.BlockSpec((tile_b, T), lambda i: (i, 0)),
        compiler_params=pltpu.CompilerParams(
            dimension_semantics=("parallel",),                 # shard tiles on v7x's 2 TCs
            vmem_limit_bytes=vmem_limit_bytes,
        ),
    )(out_e_flat, h_bf, w1_bf, b12_2d, w2_bf, w3_2d)


def reference(out_e, h, w1, b1, w2, b2, w3):
    pe = out_e @ w1 + b1                                  # (B, T, P)
    ph = (h @ w2 + b2)[:, None, :]                        # (B, 1, P)
    x = jnp.tanh(pe + ph)                                 # (B, T, P)
    s = (x @ w3.reshape(-1, 1))[..., 0]                   # (B, T)
    return jax.nn.softmax(s, axis=-1)


if __name__ == "__main__":
    B, T = 2, 8                 # batch, num_frames
    E, D, P = 32, 32, 32        # hidden_dim_en, hidden_dim_de, projected_size

    key = jax.random.PRNGKey(0)
    k = jax.random.split(key, 7)

    out_e = jax.random.normal(k[0], (B, T, E), dtype=jnp.float32)
    h = jax.random.normal(k[1], (B, D), dtype=jnp.float32)

    # Parameters, same shapes as the torch module, stored as [in, out].
    w1 = jax.random.uniform(k[2], (E, P), jnp.float32, -1.0 / E**0.5, 1.0 / E**0.5)
    b1 = jax.random.uniform(k[3], (P,), jnp.float32, -1.0 / E**0.5, 1.0 / E**0.5)
    w2 = jax.random.uniform(k[4], (D, P), jnp.float32, -1.0 / D**0.5, 1.0 / D**0.5)
    b2 = jax.random.uniform(k[5], (P,), jnp.float32, -1.0 / D**0.5, 1.0 / D**0.5)
    w3 = jax.random.uniform(k[6], (P,), jnp.float32, -1.0 / P**0.5, 1.0 / P**0.5)

    # Param prep (done once, not per call): combine the two biases, w3 as a row.
    b12 = b1 + b2

    a = attention_layer(out_e, h, w1, b12, w2, w3)
    a = jax.block_until_ready(a)

    a_ref = reference(out_e, h, w1, b1, w2, b2, w3)
    assert a.shape == (B, T)
    # Tolerance accounts for bf16 MXU operands (f32 accumulate) vs the f32 reference.
    assert jnp.allclose(a, a_ref, atol=2e-2, rtol=2e-2), "mismatch vs reference"
    # Exact-divide softmax: rows sum to 1 to f32 rounding.
    assert jnp.allclose(jnp.sum(a, axis=-1), 1.0, atol=1e-5)

    print("KERNEL_OK")
</pallas_src>

<mosaic_0001>
module attributes {stable_mosaic.version = 11 : i64} {
  func.func @attention_kernel(%arg0: i32, %arg1: memref<16x32xbf16, #tpu.memory_space<vmem>>, %arg2: memref<2x32xbf16, #tpu.memory_space<vmem>>, %arg3: memref<32x32xbf16, #tpu.memory_space<vmem>>, %arg4: memref<1x32xf32, #tpu.memory_space<vmem>>, %arg5: memref<32x32xbf16, #tpu.memory_space<vmem>>, %arg6: memref<1x32xf32, #tpu.memory_space<vmem>>, %arg7: memref<2x8xf32, #tpu.memory_space<vmem>>) attributes {dimension_semantics = [#tpu.dimension_semantics<parallel>], iteration_bounds = array<i64: 1>, scalar_prefetch = 0 : i64, scratch_operands = 0 : i64, tpu.core_type = #tpu.core_type<tc>, window_params = [{transform_indices = @transform_0, window_bounds = array<i64: 16, 32>}, {transform_indices = @transform_1, window_bounds = array<i64: 2, 32>}, {pipeline_mode = #tpu.pipeline_mode<synchronous>, transform_indices = @transform_2, window_bounds = array<i64: 32, 32>}, {pipeline_mode = #tpu.pipeline_mode<synchronous>, transform_indices = @transform_3, window_bounds = array<i64: 1, 32>}, {pipeline_mode = #tpu.pipeline_mode<synchronous>, transform_indices = @transform_4, window_bounds = array<i64: 32, 32>}, {pipeline_mode = #tpu.pipeline_mode<synchronous>, transform_indices = @transform_5, window_bounds = array<i64: 1, 32>}, {transform_indices = @transform_6, window_bounds = array<i64: 2, 8>}]} {
    %c0 = arith.constant 0 : index
    %c0_0 = arith.constant 0 : index
    %0 = vector.load %arg1[%c0, %c0_0] : memref<16x32xbf16, #tpu.memory_space<vmem>>, vector<16x32xbf16>
    %c0_1 = arith.constant 0 : index
    %c0_2 = arith.constant 0 : index
    %1 = vector.load %arg3[%c0_1, %c0_2] : memref<32x32xbf16, #tpu.memory_space<vmem>>, vector<32x32xbf16>
    %cst = arith.constant dense<0.000000e+00> : vector<16x32xf32>
    %2 = tpu.matmul %0, %1, %cst {dimension_numbers = #tpu.dot_dimension_numbers<[1], [0], [0], [1], [0, 0, 1, 1], [], []>} : vector<16x32xbf16>, vector<32x32xbf16>, vector<16x32xf32> -> vector<16x32xf32>
    %c0_3 = arith.constant 0 : index
    %c0_4 = arith.constant 0 : index
    %3 = vector.load %arg2[%c0_3, %c0_4] : memref<2x32xbf16, #tpu.memory_space<vmem>>, vector<2x32xbf16>
    %c0_5 = arith.constant 0 : index
    %c0_6 = arith.constant 0 : index
    %4 = vector.load %arg5[%c0_5, %c0_6] : memref<32x32xbf16, #tpu.memory_space<vmem>>, vector<32x32xbf16>
    %cst_7 = arith.constant dense<0.000000e+00> : vector<2x32xf32>
    %5 = tpu.matmul %3, %4, %cst_7 {dimension_numbers = #tpu.dot_dimension_numbers<[1], [0], [0], [1], [0, 0, 1, 1], [], []>} : vector<2x32xbf16>, vector<32x32xbf16>, vector<2x32xf32> -> vector<2x32xf32>
    %c0_8 = arith.constant 0 : index
    %c0_9 = arith.constant 0 : index
    %6 = vector.load %arg4[%c0_8, %c0_9] : memref<1x32xf32, #tpu.memory_space<vmem>>, vector<1x32xf32>
    %7 = vector.broadcast %6 : vector<1x32xf32> to vector<2x32xf32>
    %8 = arith.addf %5, %7 : vector<2x32xf32>
    %9 = vector.shape_cast %2 : vector<16x32xf32> to vector<2x8x32xf32>
    %10 = vector.shape_cast %8 : vector<2x32xf32> to vector<2x1x32xf32>
    %11 = vector.broadcast %10 : vector<2x1x32xf32> to vector<2x8x32xf32>
    %12 = arith.addf %9, %11 : vector<2x8x32xf32>
    %13 = math.tanh %12 : vector<2x8x32xf32>
    %c0_10 = arith.constant 0 : index
    %c0_11 = arith.constant 0 : index
    %14 = vector.load %arg6[%c0_10, %c0_11] : memref<1x32xf32, #tpu.memory_space<vmem>>, vector<1x32xf32>
    %15 = vector.shape_cast %14 : vector<1x32xf32> to vector<1x1x32xf32>
    %16 = vector.broadcast %15 : vector<1x1x32xf32> to vector<2x8x32xf32>
    %17 = arith.mulf %13, %16 : vector<2x8x32xf32>
    %cst_12 = arith.constant dense<0.000000e+00> : vector<2x8xf32>
    %18 = vector.multi_reduction <add>, %17, %cst_12 [2] : vector<2x8x32xf32> to vector<2x8xf32>
    %cst_13 = arith.constant dense<0xFF800000> : vector<2xf32>
    %19 = vector.multi_reduction <maximumf>, %18, %cst_13 [1] : vector<2x8xf32> to vector<2xf32>
    %20 = vector.shape_cast %19 : vector<2xf32> to vector<2x1xf32>
    %21 = vector.broadcast %20 : vector<2x1xf32> to vector<2x8xf32>
    %22 = arith.subf %18, %21 : vector<2x8xf32>
    %23 = math.exp %22 : vector<2x8xf32>
    %cst_14 = arith.constant dense<0.000000e+00> : vector<2xf32>
    %24 = vector.multi_reduction <add>, %23, %cst_14 [1] : vector<2x8xf32> to vector<2xf32>
    %25 = vector.shape_cast %24 : vector<2xf32> to vector<2x1xf32>
    %26 = vector.broadcast %25 : vector<2x1xf32> to vector<2x8xf32>
    %27 = arith.divf %23, %26 : vector<2x8xf32>
    %c0_15 = arith.constant 0 : index
    %c0_16 = arith.constant 0 : index
    %28 = vector.load %arg7[%c0_15, %c0_16] : memref<2x8xf32, #tpu.memory_space<vmem>>, vector<2x8xf32>
    tpu.vector_store %arg7[%c0_15, %c0_16], %27 {strides = array<i32>} : memref<2x8xf32, #tpu.memory_space<vmem>>, vector<2x8xf32>,
    return
  }
  func.func @transform_0(%arg0: i32) -> (i32, i32) {
    %c0_i32 = arith.constant 0 : i32
    %c0_i32_0 = arith.constant 0 : i32
    return %arg0, %c0_i32 : i32, i32
  }
  func.func @transform_1(%arg0: i32) -> (i32, i32) {
    %c0_i32 = arith.constant 0 : i32
    %c0_i32_0 = arith.constant 0 : i32
    return %arg0, %c0_i32 : i32, i32
  }
  func.func @transform_2(%arg0: i32) -> (i32, i32) {
    %c0_i32 = arith.constant 0 : i32
    %c0_i32_0 = arith.constant 0 : i32
    %c0_i32_1 = arith.constant 0 : i32
    return %c0_i32, %c0_i32_0 : i32, i32
  }
  func.func @transform_3(%arg0: i32) -> (i32, i32) {
    %c0_i32 = arith.constant 0 : i32
    %c0_i32_0 = arith.constant 0 : i32
    %c0_i32_1 = arith.constant 0 : i32
    return %c0_i32, %c0_i32_0 : i32, i32
  }
  func.func @transform_4(%arg0: i32) -> (i32, i32) {
    %c0_i32 = arith.constant 0 : i32
    %c0_i32_0 = arith.constant 0 : i32
    %c0_i32_1 = arith.constant 0 : i32
    return %c0_i32, %c0_i32_0 : i32, i32
  }
  func.func @transform_5(%arg0: i32) -> (i32, i32) {
    %c0_i32 = arith.constant 0 : i32
    %c0_i32_0 = arith.constant 0 : i32
    %c0_i32_1 = arith.constant 0 : i32
    return %c0_i32, %c0_i32_0 : i32, i32
  }
  func.func @transform_6(%arg0: i32) -> (i32, i32) {
    %c0_i32 = arith.constant 0 : i32
    %c0_i32_0 = arith.constant 0 : i32
    return %arg0, %c0_i32 : i32, i32
  }
}

</mosaic_0001>

<llo_original>
// kernel: tpu_custom_call.1
$region0: #{tpu_custom_call.1}
  #allocation0 [shape = 'u32[]', space=smem, size = 0x4, offset = 0x4, fixed_abs, tag = 'smem constant byte address 0x4 - core index']
  #allocation1 [shape = 'u32[144,128]{1,0:T(1,128)}', space=vmem, size = 0x12000, scoped, tag = 'internal scratch']
  %s0 = inlined_call_operand.hbm [shape: bf16[16,32], index: 0, kind: input, shape index: {}]
  %s1 = inlined_call_operand.vmem [shape: bf16[2,32], index: 1, kind: input, shape index: {}]
  %s2 = inlined_call_operand.hbm [shape: bf16[32,32], index: 2, kind: input, shape index: {}]
  %s3 = inlined_call_operand.vmem [shape: f32[1,32], index: 3, kind: input, shape index: {}]
  %s4 = inlined_call_operand.hbm [shape: bf16[32,32], index: 4, kind: input, shape index: {}]
  %s5 = inlined_call_operand.vmem [shape: f32[1,32], index: 5, kind: input, shape index: {}]
  %s6 = inlined_call_operand.hbm [shape: f32[2,8], index: 6, kind: output, shape index: {}]
  %s7 = sld [smem:[#allocation0]]
  $region46: #{tpu_custom_call.1} parent=0
    _
  %s9 = ssub.s32 1, %s7
  %s10 = scalar_select 0, %s9, %s7
  $region1: #{tpu_custom_call.1} parent=0
    #allocation2 [shape = 'u8[4096]{0}', space=vmem, size = 0x1000, scoped, tag = 'input window, operand 0, single buffered']
    #allocation3 [shape = 's32[1]{0}', space=sflag, size = 0x4, scoped, tag = 'scoped memory for tpu_custom_call.1']
    #allocation4 [shape = 's32[1]{0}', space=sflag, size = 0x4, scoped, tag = 'scoped memory for tpu_custom_call.1']
    #allocation5 [shape = 'u8[8192]{0}', space=vmem, size = 0x2000, scoped, tag = 'input window, operand 2, single buffered']
    #allocation6 [shape = 's32[1]{0}', space=sflag, size = 0x4, scoped, tag = 'scoped memory for tpu_custom_call.1']
    #allocation7 [shape = 'u8[8192]{0}', space=vmem, size = 0x2000, scoped, tag = 'input window, operand 4, single buffered']
    #allocation8 [shape = 'u8[1024]{0}', space=vmem, size = 0x400, scoped, tag = 'output window, operand 0, single buffered']
    %11 = vsyncpa [#allocation3], 0
    %12 = vsyncpa [#allocation6], 0
    %13 = vsyncpa [#allocation4], 0
    // Predicated region
    $region2: #{tpu_custom_call.1} parent=1 // pred_check
      _
    $region3: #{tpu_custom_call.1} parent=1 // pred_check_branch
      %15 = sbr.rel (0) target = $region5
    $region4: #{tpu_custom_call.1} parent=1 // pred_region
      %s17 = ssub.s32 128, 128
      %18 = vsyncadd [#allocation3], %s17
      %s19 = sshll.u32 [#allocation2], 4
      %s20 = int_to_ptr.vmem [resolvable:$true] %s19
      %25 = dma.hbm_to_vmem [thread:$0]  %s0, 128, %s20, [#allocation3], 64, 64, 4
    $region5: #{tpu_custom_call.1} parent=1 // pred_fallthru
      _
    // Predicated region
    $region6: #{tpu_custom_call.1} parent=1 // pred_check
      _
    $region7: #{tpu_custom_call.1} parent=1 // pred_check_branch
      %27 = sbr.rel (0) target = $region9
    $region8: #{tpu_custom_call.1} parent=1 // pred_region
      _
    $region9: #{tpu_custom_call.1} parent=1 // pred_fallthru
      _
    // Predicated region
    $region10: #{tpu_custom_call.1} parent=1 // pred_check
      _
    $region11: #{tpu_custom_call.1} parent=1 // pred_check_branch
      %29 = sbr.rel (0) target = $region13
    $region12: #{tpu_custom_call.1} parent=1 // pred_region
      %s31 = ssub.s32 256, 256
      %32 = vsyncadd [#allocation6], %s31
      %s33 = sshll.u32 [#allocation5], 4
      %s34 = int_to_ptr.vmem [resolvable:$true] %s33
      %39 = dma.hbm_to_vmem [thread:$0]  %s2, 256, %s34, [#allocation6], 64, 64, 4
    $region13: #{tpu_custom_call.1} parent=1 // pred_fallthru
      _
    // Predicated region
    $region14: #{tpu_custom_call.1} parent=1 // pred_check
      _
    $region15: #{tpu_custom_call.1} parent=1 // pred_check_branch
      %41 = sbr.rel (0) target = $region17
    $region16: #{tpu_custom_call.1} parent=1 // pred_region
      _
    $region17: #{tpu_custom_call.1} parent=1 // pred_fallthru
      _
    // Predicated region
    $region18: #{tpu_custom_call.1} parent=1 // pred_check
      _
    $region19: #{tpu_custom_call.1} parent=1 // pred_check_branch
      %43 = sbr.rel (0) target = $region21
    $region20: #{tpu_custom_call.1} parent=1 // pred_region
      %s45 = ssub.s32 256, 256
      %46 = vsyncadd [#allocation6], %s45
      %s47 = sshll.u32 [#allocation7], 4
      %s48 = int_to_ptr.vmem [resolvable:$true] %s47
      %53 = dma.hbm_to_vmem [thread:$0]  %s4, 256, %s48, [#allocation6], 64, 64, 4
    $region21: #{tpu_custom_call.1} parent=1 // pred_fallthru
      _
    // Predicated region
    $region22: #{tpu_custom_call.1} parent=1 // pred_check
      _
    $region23: #{tpu_custom_call.1} parent=1 // pred_check_branch
      %55 = sbr.rel (0) target = $region25
    $region24: #{tpu_custom_call.1} parent=1 // pred_region
      _
    $region25: #{tpu_custom_call.1} parent=1 // pred_fallthru
      _
    // Predicated region
    $region26: #{tpu_custom_call.1} parent=1 // pred_check
      _
    $region27: #{tpu_custom_call.1} parent=1 // pred_check_branch
      %57 = sbr.rel (0) target = $region29
    $region28: #{tpu_custom_call.1} parent=1 // pred_region
      %58 = dma.done [#allocation3], 128
    $region29: #{tpu_custom_call.1} parent=1 // pred_fallthru
      _
    // Predicated region
    $region30: #{tpu_custom_call.1} parent=1 // pred_check
      _
    $region31: #{tpu_custom_call.1} parent=1 // pred_check_branch
      %60 = sbr.rel (0) target = $region33
    $region32: #{tpu_custom_call.1} parent=1 // pred_region
      %61 = dma.done [#allocation6], 256
    $region33: #{tpu_custom_call.1} parent=1 // pred_fallthru
      _
    // Predicated region
    $region34: #{tpu_custom_call.1} parent=1 // pred_check
      _
    $region35: #{tpu_custom_call.1} parent=1 // pred_check_branch
      %63 = sbr.rel (0) target = $region37
    $region36: #{tpu_custom_call.1} parent=1 // pred_region
      %64 = dma.done [#allocation6], 256
    $region37: #{tpu_custom_call.1} parent=1 // pred_fallthru
      _
    %v66 = vld [vmem:[#allocation2] sm:$0xf]
    %v67 = vld [vmem:[#allocation2 + $0x4] sm:$0xf]
    %v68 = vld [vmem:[#allocation5] sm:$0xf]
    %v69 = vld [vmem:[#allocation5 + $0x4] sm:$0xf]
    %v70 = vld [vmem:[#allocation5 + $0x8] sm:$0xf]
    %v71 = vld [vmem:[#allocation5 + $0xc] sm:$0xf]
    %v74 = vunpack.c.l.b16 %v66
    %v75 = vunpack.c.l.b16 %v67
    %v76 = vpack.c.b16 %v75, %v74
    %v81 = vunpack.c.l.b16 %v68
    %v82 = vunpack.c.l.b16 %v69
    %v83 = vunpack.c.l.b16 %v70
    %v84 = vunpack.c.l.b16 %v71
    %v85 = vpack.c.b16 %v82, %v81
    %v86 = vpack.c.b16 %v84, %v83
    %vm89 = vcmask 261120
    %v91 = vsel %vm89, %v76, 0
    %93 = vmatprep.subr.bf16.mxu0 0
    %94 = vmatpush1.bf16.msra.mxu0 %v85
    %95 = vmatprep.subr.bf16.mxu0 0
    %96 = vmatpush1.bf16.msra.mxu0 %v86
    %97 = vmatprep.subr.bf16.mxu0 0
    %98 = vmatpush1.bf16.msra.mxu0 0
    %99 = vmatprep.subr.bf16.mxu0 0
    %100 = vmatpush1.bf16.msra.mxu0 0
    %101 = vmatprep.subr.bf16.mxu0 0
    %102 = vmatpush1.bf16.msra.mxu0 0
    %103 = vmatprep.subr.bf16.mxu0 0
    %104 = vmatpush1.bf16.msra.mxu0 0
    %105 = vmatprep.subr.bf16.mxu0 0
    %106 = vmatpush1.bf16.msra.mxu0 0
    %107 = vmatprep.subr.bf16.mxu0 0
    %108 = vmatpush1.bf16.msra.mxu0 0
    %109 = vmatprep.subr.bf16.mxu0 0
    %110 = vmatpush1.bf16.msra.mxu0 0
    %111 = vmatprep.subr.bf16.mxu0 0
    %112 = vmatpush1.bf16.msra.mxu0 0
    %113 = vmatprep.subr.bf16.mxu0 0
    %114 = vmatpush1.bf16.msra.mxu0 0
    %115 = vmatprep.subr.bf16.mxu0 0
    %116 = vmatpush1.bf16.msra.mxu0 0
    %117 = vmatprep.subr.bf16.mxu0 0
    %118 = vmatpush1.bf16.msra.mxu0 0
    %119 = vmatprep.subr.bf16.mxu0 0
    %120 = vmatpush1.bf16.msra.mxu0 0
    %121 = vmatprep.subr.bf16.mxu0 0
    %122 = vmatpush1.bf16.msra.mxu0 0
    %123 = vmatprep.subr.bf16.mxu0 0
    %124 = vmatpush1.bf16.msra.mxu0 0
    %125 = vmatprep.mubr.bf16.mxu0 0
    %126 = vmatmul.mubr.bf16.gmra.mrb[0].mxu0 %v91
    %v127 = vpop.f32.mrb[0].mxu0
    %v128 = vadd.f32 0.0, %v127
    %v129 = vpop.f32.mrb[0].mxu0
    %v130 = vpop.f32.mrb[0].mxu0
    %v131 = vadd.f32 0.0, %v130
    %v132 = vpop.f32.mrb[0].mxu0
    %133 = vdwg.mxu0
    %v134 = vld [vmem:[%s1] sm:$0x1]
    %v135 = vld [vmem:[#allocation7] sm:$0xf]
    %v136 = vld [vmem:[#allocation7 + $0x4] sm:$0xf]
    %v137 = vld [vmem:[#allocation7 + $0x8] sm:$0xf]
    %v138 = vld [vmem:[#allocation7 + $0xc] sm:$0xf]
    %v139 = vld [vmem:[%s3] sm:$0x1]
    %v141 = vlaneseq
    %v142 = vshrl.u32 %v141, 7
    %v143 = vsub.s32 0, %v142
    %v144 = vrot.slane %v139, %v143
    %v150 = vunpack.c.l.b16 %v135
    %v151 = vunpack.c.l.b16 %v136
    %v152 = vunpack.c.l.b16 %v137
    %v153 = vunpack.c.l.b16 %v138
    %v154 = vpack.c.b16 %v151, %v150
    %v155 = vpack.c.b16 %v153, %v152
    %v159 = vsel %vm89, %v134, 0
    %161 = vmatprep.subr.bf16.mxu0 0
    %162 = vmatpush1.bf16.msra.mxu0 %v154
    %163 = vmatprep.subr.bf16.mxu0 0
    %164 = vmatpush1.bf16.msra.mxu0 %v155
    %165 = vmatprep.subr.bf16.mxu0 0
    %166 = vmatpush1.bf16.msra.mxu0 0
    %167 = vmatprep.subr.bf16.mxu0 0
    %168 = vmatpush1.bf16.msra.mxu0 0
    %169 = vmatprep.subr.bf16.mxu0 0
    %170 = vmatpush1.bf16.msra.mxu0 0
    %171 = vmatprep.subr.bf16.mxu0 0
    %172 = vmatpush1.bf16.msra.mxu0 0
    %173 = vmatprep.subr.bf16.mxu0 0
    %174 = vmatpush1.bf16.msra.mxu0 0
    %175 = vmatprep.subr.bf16.mxu0 0
    %176 = vmatpush1.bf16.msra.mxu0 0
    %177 = vmatprep.subr.bf16.mxu0 0
    %178 = vmatpush1.bf16.msra.mxu0 0
    %179 = vmatprep.subr.bf16.mxu0 0
    %180 = vmatpush1.bf16.msra.mxu0 0
    %181 = vmatprep.subr.bf16.mxu0 0
    %182 = vmatpush1.bf16.msra.mxu0 0
    %183 = vmatprep.subr.bf16.mxu0 0
    %184 = vmatpush1.bf16.msra.mxu0 0
    %185 = vmatprep.subr.bf16.mxu0 0
    %186 = vmatpush1.bf16.msra.mxu0 0
    %187 = vmatprep.subr.bf16.mxu0 0
    %188 = vmatpush1.bf16.msra.mxu0 0
    %189 = vmatprep.subr.bf16.mxu0 0
    %190 = vmatpush1.bf16.msra.mxu0 0
    %191 = vmatprep.subr.bf16.mxu0 0
    %192 = vmatpush1.bf16.msra.mxu0 0
    %193 = vmatprep.mubr.bf16.mxu0 0
    %194 = vmatmul.mubr.bf16.gmra.mrb[0].mxu0 %v159
    %v195 = vpop.f32.mrb[0].mxu0
    %v196 = vadd.f32 %v144, %v195
    %v197 = vpop.f32.mrb[0].mxu0
    %v198 = vpop.f32.mrb[0].mxu0
    %v199 = vpop.f32.mrb[0].mxu0
    %200 = vdwg.mxu0
    %v203 = vunpack.c.l.s4 1966171168
    %v204 = vunpack.c.0.s8 %v203
    %v205 = vlaneseq
    %v206 = vshrl.u32 %v205, 7
    %v207 = vsub.s32 %v204, %v206
    %v208 = vrot.slane %v196, %v207
    %v209 = vcombine.high %v208, %v208
    %v211 = vunpack.c.l.s4 1966171168
    %v212 = vunpack.c.0.s8 %v211
    %v213 = vlaneseq
    %v214 = vshrl.u32 %v213, 7
    %v215 = vsub.s32 %v212, %v214
    %v216 = vrot.slane %v208, %v215
    %v218 = vunpack.c.l.s4 1966171168
    %v219 = vunpack.c.0.s8 %v218
    %v220 = vlaneseq
    %v221 = vshrl.u32 %v220, 7
    %v222 = vsub.s32 %v219, %v221
    %v223 = vrot.slane %v209, %v222
    %v224 = vlaneseq
    %v225 = vshrl.u32 %v224, 7
    %v226 = vsub.s32 0, %v225
    %v227 = vrot.slane %v216, %v226
    %v228 = vlaneseq
    %v229 = vshrl.u32 %v228, 7
    %v230 = vsub.s32 0, %v229
    %v231 = vrot.slane %v223, %v230
    %v234 = vadd.f32 %v128, %v227
    %v235 = vadd.f32 %v131, %v231
    %v236 = vtanh.pop %v234
    %v237 = vtanh.pop %v235
    %v238 = vld [vmem:[%s5] sm:$0x1]
    %v240 = vlaneseq
    %v241 = vshrl.u32 %v240, 7
    %v242 = vsub.s32 0, %v241
    %v243 = vrot.slane %v238, %v242
    %v245 = vmul.f32 %v236, %v243
    %v246 = vmul.f32 %v237, %v243
    %v247 = vsel %vm89, %v245, 0.0
    %248 = vadd.xlane.f32.xlu0 %v247
    %v249 = vpop.xlane.xlu0 %248
    %v250 = vsel %vm89, %v246, 0.0
    %251 = vadd.xlane.f32.xlu0 %v250
    %v252 = vpop.xlane.xlu0 %251
    %v255 = vlaneseq
    %v256 = vand.u32 %v255, 127
    %v257 = vlaneseq
    %v258 = vshrl.u32 %v257, 7
    %v259 = vsub.s32 %v256, %v258
    %v260 = vrot.slane %v249, %v259
    %v261 = vlaneseq
    %v262 = vshrl.u32 %v261, 7
    %v263 = vsub.s32 %v256, %v262
    %v264 = vrot.slane %v252, %v263
    %vm265 = vcmask 1041409
    %v266 = vsel %vm265, %v264, %v260
    %vm268 = vcmask 58368
    %v269 = vsel %vm268, %v266, -inf
    %270 = vmax.xlane.f32.xlu0 %v269
    %v271 = vpop.xlane.xlu0 %270
    %v273 = vlaneseq
    %v274 = vshrl.u32 %v273, 7
    %v275 = vsub.s32 0, %v274
    %v276 = vrot.slane %v271, %v275
    %v277 = vlaneseq
    %v278 = vshrl.u32 %v277, 7
    %v279 = vsub.s32 1, %v278
    %v280 = vrot.slane %v271, %v279
    %v283 = vsub.f32 %v249, %v276
    %v284 = vsub.f32 %v252, %v280
    %v285 = vmul.f32 %v283, 1.442695
    %v286 = vpow.pop %v285
    %v287 = vmul.f32 %v284, 1.442695
    %v288 = vpow.pop %v287
    %291 = vset.pattern.permute.xlu0 0
    %292 = vperm.xlu0 %291, %v286
    %v293 = vpop.permute.xlu0 %292
    %294 = vset.pattern.permute.xlu0 0
    %295 = vperm.xlu0 %294, %v288
    %v296 = vpop.permute.xlu0 %295
    %v297 = vlaneseq
    %v298 = vshrl.u32 %v297, 7
    %v299 = vsub.s32 %v256, %v298
    %v300 = vrot.slane %v293, %v299
    %v301 = vlaneseq
    %v302 = vshrl.u32 %v301, 7
    %v303 = vsub.s32 %v256, %v302
    %v304 = vrot.slane %v296, %v303
    %v305 = vsel %vm265, %v304, %v300
    %v307 = vsel %vm268, %v305, 0.0
    %308 = vadd.xlane.f32.xlu0 %v307
    %v309 = vpop.xlane.xlu0 %308
    %v311 = vlaneseq
    %v312 = vshrl.u32 %v311, 7
    %v313 = vsub.s32 0, %v312
    %v314 = vrot.slane %v309, %v313
    %v315 = vlaneseq
    %v316 = vshrl.u32 %v315, 7
    %v317 = vsub.s32 1, %v316
    %v318 = vrot.slane %v309, %v317
    %v321 = vrcp.pop %v314
    %v322 = vmul.f32 %v286, %v321
    %v323 = vrcp.pop %v318
    %v324 = vmul.f32 %v288, %v323
    %327 = vset.pattern.permute.xlu0 0
    %328 = vperm.xlu0 %327, %v322
    %v329 = vpop.permute.xlu0 %328
    %330 = vset.pattern.permute.xlu0 0
    %331 = vperm.xlu0 %330, %v324
    %v332 = vpop.permute.xlu0 %331
    %v333 = vlaneseq
    %v334 = vshrl.u32 %v333, 7
    %v335 = vsub.s32 %v256, %v334
    %v336 = vrot.slane %v329, %v335
    %v337 = vlaneseq
    %v338 = vshrl.u32 %v337, 7
    %v339 = vsub.s32 %v256, %v338
    %v340 = vrot.slane %v332, %v339
    %v341 = vsel %vm265, %v340, %v336
    %343 = vst.msk [vmem:[#allocation8] sm:$0x3] %vm268, %v341
    // Predicated region
    $region38: #{tpu_custom_call.1} parent=1 // pred_check
      _
    $region39: #{tpu_custom_call.1} parent=1 // pred_check_branch
      %345 = sbr.rel (0) target = $region41
    $region40: #{tpu_custom_call.1} parent=1 // pred_region
      %s347 = ssub.s32 32, 32
      %348 = vsyncadd [#allocation4], %s347
      %s350 = sshll.u32 [#allocation8], 4
      %s351 = int_to_ptr.vmem [resolvable:$true] %s350
      %353 = dma.vmem_to_hbm [thread:$0]  %s351, 32, %s6, [#allocation4]
    $region41: #{tpu_custom_call.1} parent=1 // pred_fallthru
      _
    // Predicated region
    $region42: #{tpu_custom_call.1} parent=1 // pred_check
      _
    $region43: #{tpu_custom_call.1} parent=1 // pred_check_branch
      %355 = sbr.rel (0) target = $region45
    $region44: #{tpu_custom_call.1} parent=1 // pred_region
      %356 = dma.done [#allocation4], 32
    $region45: #{tpu_custom_call.1} parent=1 // pred_fallthru
      _
    %357 = vsyncpa [#allocation3], 1
    %358 = vsyncpa [#allocation6], 1
    %359 = vsyncpa [#allocation4], 1

</llo_original>
